<compile_context>
chip_gen: v7x
topology: tpu7x:2x2x1
jax: 0.10.0
libtpu: 0.0.40
codegen_flags: <defaults>
</compile_context>

<pallas_src>
import jax
import jax.numpy as jnp
from jax.experimental import pallas as pl
from jax.experimental.pallas import tpu as pltpu


def _round_up(x, m):
    return ((x + m - 1) // m) * m


# -----------------------------------------------------------------------------
# Kernel
# -----------------------------------------------------------------------------
def _policy_kernel(doc_ref, curw1_ref, w1d_ref, b1_ref, w2_ref, b2_ref,
                   ce_t_ref, cb_ref, out_ref):
    # Layer 1: doc @ W1[:D]  (bf16 x bf16 -> f32)  + M[cur] + b1, ReLU
    h1 = jnp.dot(doc_ref[...], w1d_ref[...], preferred_element_type=jnp.float32)
    h1 = jnp.maximum(h1 + curw1_ref[...] + b1_ref[...], 0.0)

    # Layer 2: h1 @ W2 + b2, ReLU
    h2 = jnp.dot(h1.astype(jnp.bfloat16), w2_ref[...],
                 preferred_element_type=jnp.float32)
    h2 = jnp.maximum(h2 + b2_ref[...], 0.0)

    # All-class logits on the MXU, lane-dense output: (TB, E_pad) @ (E_pad, C_pad)
    logits = jnp.dot(h2.astype(jnp.bfloat16), ce_t_ref[...],
                     preferred_element_type=jnp.float32)
    out_ref[...] = (logits + cb_ref[...]).astype(out_ref.dtype)


# -----------------------------------------------------------------------------
# One-time parameter preparation (hoisted out of the per-call path)
# -----------------------------------------------------------------------------
def prepare_params(params, in_dim):
    class_embed = params["class_embed"]            # (C, E) f32
    class_embed_bias = params["class_embed_bias"]  # (C, 1) f32
    w1, b1 = params["w1"], params["b1"]            # (D+E, L1), (1, L1)
    w2, b2 = params["w2"], params["b2"]            # (L1, E),   (1, E)

    C, E = class_embed.shape
    D = in_dim
    L1 = w1.shape[1]
    D_pad, L1_pad, E_pad, C_pad = (_round_up(v, 128) for v in (D, L1, E, C))

    # doc-part of W1, zero-padded + bf16 for the MXU
    w1d = jnp.zeros((D_pad, L1_pad), jnp.bfloat16)
    w1d = w1d.at[:D, :L1].set(w1[:D].astype(jnp.bfloat16))

    # Current-class contribution to layer 1:  M = class_embed @ W1[D:]  (f32, exact)
    m_cur = class_embed @ w1[D:]                                  # (C, L1)
    m_cur = jnp.zeros((C, L1_pad), jnp.float32).at[:, :L1].set(m_cur)

    b1p = jnp.zeros((1, L1_pad), jnp.float32).at[:, :L1].set(b1)

    w2p = jnp.zeros((L1_pad, E_pad), jnp.bfloat16)
    w2p = w2p.at[:L1, :E].set(w2.astype(jnp.bfloat16))
    b2p = jnp.zeros((1, E_pad), jnp.float32).at[:, :E].set(b2)

    # Padded, transposed class table (bf16) + bias (f32), computed once
    ce_t = jnp.zeros((E_pad, C_pad), jnp.bfloat16)
    ce_t = ce_t.at[:E, :C].set(class_embed.T.astype(jnp.bfloat16))
    cb = jnp.zeros((1, C_pad), jnp.float32).at[:, :C].set(class_embed_bias.T)

    dims = dict(D=D, E=E, L1=L1, C=C,
                D_pad=D_pad, L1_pad=L1_pad, E_pad=E_pad, C_pad=C_pad)
    return dict(w1d=w1d, m_cur=m_cur, b1=b1p, w2=w2p, b2=b2p,
                ce_t=ce_t, cb=cb, dims=dims)


def _vmem_bytes(TB, D_pad, L1_pad, E_pad, C_pad):
    # Conservative: everything double-buffered.
    stream = TB * D_pad * 2 + TB * L1_pad * 4 + TB * C_pad * 4
    fixed = (D_pad * L1_pad * 2 + L1_pad * 4 + L1_pad * E_pad * 2 + E_pad * 4
             + E_pad * C_pad * 2 + C_pad * 4)
    return 2 * (stream + fixed)


# -----------------------------------------------------------------------------
# Forward wrapper
# -----------------------------------------------------------------------------
def policy_forward(doc_vec, cur_class_batch, next_classes_batch, prep,
                   *, batch_tile=None):
    """Pallas-backed Policy.forward (use_cur_class_embed, use_l1, use_l2)."""
    d = prep["dims"]
    D, D_pad = d["D"], d["D_pad"]
    L1_pad, E_pad, C_pad = d["L1_pad"], d["E_pad"], d["C_pad"]
    B = doc_vec.shape[0]

    # ---- per-call glue (plain JAX): layer-1 contribution of the current class
    cur_w1 = prep["m_cur"][cur_class_batch]                      # (B, L1_pad) f32

    # ---- batch tile: fit a conservative VMEM budget; >=2 grid steps for
    #      megacore (v7x) when the batch allows
    if batch_tile is None:
        TB = min(512, _round_up(B, 8))
        if B > 8:
            TB = min(TB, _round_up(-(-B // 2), 8))
    else:
        TB = _round_up(max(8, min(batch_tile, B)), 8)
    VMEM_BUDGET = 40 * 1024 * 1024        # safe on v7x (64 MiB) / v5e / v6e
    while TB > 8 and _vmem_bytes(TB, D_pad, L1_pad, E_pad, C_pad) > VMEM_BUDGET:
        TB = max(8, _round_up(TB // 2, 8))

    B_pad = _round_up(B, TB)
    grid = (B_pad // TB,)

    # ---- pad/cast streamed inputs
    doc = jnp.zeros((B_pad, D_pad), jnp.bfloat16)
    doc = doc.at[:B, :D].set(doc_vec.astype(jnp.bfloat16))
    if B_pad != B:
        cur_w1 = jnp.pad(cur_w1, ((0, B_pad - B), (0, 0)))

    vmem_needed = _vmem_bytes(TB, D_pad, L1_pad, E_pad, C_pad)
    vmem_limit = int(min(64 * 1024 * 1024,
                         max(32 * 1024 * 1024, vmem_needed + 4 * 1024 * 1024)))

    flops = 2 * B_pad * (D_pad * L1_pad + L1_pad * E_pad + E_pad * C_pad)
    bytes_accessed = (B_pad * D_pad * 2 + B_pad * L1_pad * 4 + B_pad * C_pad * 4
                      + D_pad * L1_pad * 2 + L1_pad * E_pad * 2
                      + E_pad * C_pad * 2 + (L1_pad + E_pad + C_pad) * 4)
    cost = pl.CostEstimate(flops=flops, transcendentals=0,
                           bytes_accessed=bytes_accessed)

    logits_full = pl.pallas_call(
        _policy_kernel,
        out_shape=jax.ShapeDtypeStruct((B_pad, C_pad), jnp.float32),
        grid_spec=pltpu.PrefetchScalarGridSpec(
            num_scalar_prefetch=0,
            grid=grid,
            in_specs=[
                pl.BlockSpec((TB, D_pad), lambda i: (i, 0)),       # doc (bf16)
                pl.BlockSpec((TB, L1_pad), lambda i: (i, 0)),      # M[cur] (f32)
                pl.BlockSpec((D_pad, L1_pad), lambda i: (0, 0)),   # W1[:D] (bf16)
                pl.BlockSpec((1, L1_pad), lambda i: (0, 0)),       # b1
                pl.BlockSpec((L1_pad, E_pad), lambda i: (0, 0)),   # W2 (bf16)
                pl.BlockSpec((1, E_pad), lambda i: (0, 0)),        # b2
                pl.BlockSpec((E_pad, C_pad), lambda i: (0, 0)),    # class_embed^T (bf16)
                pl.BlockSpec((1, C_pad), lambda i: (0, 0)),        # class bias
            ],
            out_specs=pl.BlockSpec((TB, C_pad), lambda i: (i, 0)),
        ),
        compiler_params=pltpu.CompilerParams(
            dimension_semantics=("parallel",),
            vmem_limit_bytes=vmem_limit),
        cost_estimate=cost,
    )(doc, cur_w1, prep["w1d"], prep["b1"], prep["w2"], prep["b2"],
      prep["ce_t"], prep["cb"])

    # ---- glue: keep the N candidate classes per row (indices are < C)
    probs = jnp.take_along_axis(logits_full[:B], next_classes_batch, axis=1)  # (B, N)
    return probs


# -----------------------------------------------------------------------------
# Parameter init (mirrors the PyTorch module shapes) and a pure-JAX reference
# -----------------------------------------------------------------------------
def init_params(key, n_class, class_embed_size, in_dim, l1_size):
    k = jax.random.split(key, 6)
    E = class_embed_size
    stdv = 1.0 / jnp.sqrt(E)
    in_total = in_dim + E  # use_cur_class_embed=True
    s1 = 1.0 / jnp.sqrt(in_total)
    s2 = 1.0 / jnp.sqrt(l1_size)
    return {
        "class_embed": jax.random.uniform(k[0], (n_class, E), jnp.float32, -stdv, stdv),
        "class_embed_bias": jax.random.uniform(k[1], (n_class, 1), jnp.float32, -stdv, stdv),
        # stored as (in, out) == PyTorch weight.T
        "w1": jax.random.uniform(k[2], (in_total, l1_size), jnp.float32, -s1, s1),
        "b1": jax.random.uniform(k[3], (1, l1_size), jnp.float32, -s1, s1),
        "w2": jax.random.uniform(k[4], (l1_size, E), jnp.float32, -s2, s2),
        "b2": jax.random.uniform(k[5], (1, E), jnp.float32, -s2, s2),
    }


def _reference_forward(doc_vec, cur_ids, next_ids, p):
    cur_emb = p["class_embed"][cur_ids]
    nce = p["class_embed"][next_ids]
    nb = p["class_embed_bias"][next_ids][..., 0]
    states = jnp.concatenate([doc_vec, cur_emb], axis=1)
    h1 = jax.nn.relu(states @ p["w1"] + p["b1"])
    h2 = jax.nn.relu(h1 @ p["w2"] + p["b2"])
    return jnp.einsum("bne,be->bn", nce, h2) + nb


if __name__ == "__main__":
    # Small shapes consistent with the module.
    B = 16            # batch
    N = 8             # candidate next classes per sample
    n_class = 32
    E = 32            # args.class_embed_size
    D = 32            # in_dim (doc_vec dimension from base_model)
    L1 = 64           # args.l1_size

    key = jax.random.PRNGKey(0)
    kp, kd, kc, kn = jax.random.split(key, 4)

    params = init_params(kp, n_class, E, D, L1)
    doc_vec = jax.random.normal(kd, (B, D), jnp.float32)
    cur_class_batch = jax.random.randint(kc, (B,), 0, n_class)
    next_classes_batch = jax.random.randint(kn, (B, N), 0, n_class)
    assert int(next_classes_batch.max()) < n_class  # padded columns never selected

    prep = prepare_params(params, in_dim=D)         # one-time (hoisted) prep

    out = policy_forward(doc_vec, cur_class_batch, next_classes_batch, prep)
    out = jax.block_until_ready(out)

    ref = _reference_forward(doc_vec, cur_class_batch, next_classes_batch, params)
    assert out.shape == (B, N)
    # bf16 MXU operands with f32 accumulation => small, nonzero deviation vs f32 ref
    assert jnp.allclose(out, ref, atol=2e-2, rtol=2e-2), float(jnp.abs(out - ref).max())

    print("KERNEL_OK")
</pallas_src>

<mosaic_0001>
module attributes {stable_mosaic.version = 11 : i64} {
  func.func @_policy_kernel(%arg0: i32, %arg1: memref<8x128xbf16, #tpu.memory_space<vmem>>, %arg2: memref<8x128xf32, #tpu.memory_space<vmem>>, %arg3: memref<128x128xbf16, #tpu.memory_space<vmem>>, %arg4: memref<1x128xf32, #tpu.memory_space<vmem>>, %arg5: memref<128x128xbf16, #tpu.memory_space<vmem>>, %arg6: memref<1x128xf32, #tpu.memory_space<vmem>>, %arg7: memref<128x128xbf16, #tpu.memory_space<vmem>>, %arg8: memref<1x128xf32, #tpu.memory_space<vmem>>, %arg9: memref<8x128xf32, #tpu.memory_space<vmem>>) attributes {dimension_semantics = [#tpu.dimension_semantics<parallel>], iteration_bounds = array<i64: 2>, scalar_prefetch = 0 : i64, scratch_operands = 0 : i64, tpu.core_type = #tpu.core_type<tc>, window_params = [{transform_indices = @transform_0, window_bounds = array<i64: 8, 128>}, {transform_indices = @transform_1, window_bounds = array<i64: 8, 128>}, {pipeline_mode = #tpu.pipeline_mode<synchronous>, transform_indices = @transform_2, window_bounds = array<i64: 128, 128>}, {pipeline_mode = #tpu.pipeline_mode<synchronous>, transform_indices = @transform_3, window_bounds = array<i64: 1, 128>}, {pipeline_mode = #tpu.pipeline_mode<synchronous>, transform_indices = @transform_4, window_bounds = array<i64: 128, 128>}, {pipeline_mode = #tpu.pipeline_mode<synchronous>, transform_indices = @transform_5, window_bounds = array<i64: 1, 128>}, {pipeline_mode = #tpu.pipeline_mode<synchronous>, transform_indices = @transform_6, window_bounds = array<i64: 128, 128>}, {pipeline_mode = #tpu.pipeline_mode<synchronous>, transform_indices = @transform_7, window_bounds = array<i64: 1, 128>}, {transform_indices = @transform_8, window_bounds = array<i64: 8, 128>}]} {
    %c0 = arith.constant 0 : index
    %c0_0 = arith.constant 0 : index
    %0 = vector.load %arg1[%c0, %c0_0] : memref<8x128xbf16, #tpu.memory_space<vmem>>, vector<8x128xbf16>
    %c0_1 = arith.constant 0 : index
    %c0_2 = arith.constant 0 : index
    %1 = vector.load %arg3[%c0_1, %c0_2] : memref<128x128xbf16, #tpu.memory_space<vmem>>, vector<128x128xbf16>
    %cst = arith.constant dense<0.000000e+00> : vector<8x128xf32>
    %2 = tpu.matmul %0, %1, %cst {dimension_numbers = #tpu.dot_dimension_numbers<[1], [0], [0], [1], [0, 0, 1, 1], [], []>} : vector<8x128xbf16>, vector<128x128xbf16>, vector<8x128xf32> -> vector<8x128xf32>
    %c0_3 = arith.constant 0 : index
    %c0_4 = arith.constant 0 : index
    %3 = vector.load %arg2[%c0_3, %c0_4] : memref<8x128xf32, #tpu.memory_space<vmem>>, vector<8x128xf32>
    %4 = arith.addf %2, %3 : vector<8x128xf32>
    %c0_5 = arith.constant 0 : index
    %c0_6 = arith.constant 0 : index
    %5 = vector.load %arg4[%c0_5, %c0_6] : memref<1x128xf32, #tpu.memory_space<vmem>>, vector<1x128xf32>
    %6 = vector.broadcast %5 : vector<1x128xf32> to vector<8x128xf32>
    %7 = arith.addf %4, %6 : vector<8x128xf32>
    %cst_7 = arith.constant 0.000000e+00 : f32
    %8 = vector.broadcast %cst_7 : f32 to vector<8x128xf32>
    %9 = arith.maximumf %7, %8 : vector<8x128xf32>
    %10 = arith.truncf %9 : vector<8x128xf32> to vector<8x128xbf16>
    %c0_8 = arith.constant 0 : index
    %c0_9 = arith.constant 0 : index
    %11 = vector.load %arg5[%c0_8, %c0_9] : memref<128x128xbf16, #tpu.memory_space<vmem>>, vector<128x128xbf16>
    %cst_10 = arith.constant dense<0.000000e+00> : vector<8x128xf32>
    %12 = tpu.matmul %10, %11, %cst_10 {dimension_numbers = #tpu.dot_dimension_numbers<[1], [0], [0], [1], [0, 0, 1, 1], [], []>} : vector<8x128xbf16>, vector<128x128xbf16>, vector<8x128xf32> -> vector<8x128xf32>
    %c0_11 = arith.constant 0 : index
    %c0_12 = arith.constant 0 : index
    %13 = vector.load %arg6[%c0_11, %c0_12] : memref<1x128xf32, #tpu.memory_space<vmem>>, vector<1x128xf32>
    %14 = vector.broadcast %13 : vector<1x128xf32> to vector<8x128xf32>
    %15 = arith.addf %12, %14 : vector<8x128xf32>
    %cst_13 = arith.constant 0.000000e+00 : f32
    %16 = vector.broadcast %cst_13 : f32 to vector<8x128xf32>
    %17 = arith.maximumf %15, %16 : vector<8x128xf32>
    %18 = arith.truncf %17 : vector<8x128xf32> to vector<8x128xbf16>
    %c0_14 = arith.constant 0 : index
    %c0_15 = arith.constant 0 : index
    %19 = vector.load %arg7[%c0_14, %c0_15] : memref<128x128xbf16, #tpu.memory_space<vmem>>, vector<128x128xbf16>
    %cst_16 = arith.constant dense<0.000000e+00> : vector<8x128xf32>
    %20 = tpu.matmul %18, %19, %cst_16 {dimension_numbers = #tpu.dot_dimension_numbers<[1], [0], [0], [1], [0, 0, 1, 1], [], []>} : vector<8x128xbf16>, vector<128x128xbf16>, vector<8x128xf32> -> vector<8x128xf32>
    %c0_17 = arith.constant 0 : index
    %c0_18 = arith.constant 0 : index
    %21 = vector.load %arg8[%c0_17, %c0_18] : memref<1x128xf32, #tpu.memory_space<vmem>>, vector<1x128xf32>
    %22 = vector.broadcast %21 : vector<1x128xf32> to vector<8x128xf32>
    %23 = arith.addf %20, %22 : vector<8x128xf32>
    %c0_19 = arith.constant 0 : index
    %c0_20 = arith.constant 0 : index
    %24 = vector.load %arg9[%c0_19, %c0_20] : memref<8x128xf32, #tpu.memory_space<vmem>>, vector<8x128xf32>
    tpu.vector_store %arg9[%c0_19, %c0_20], %23 {strides = array<i32>} : memref<8x128xf32, #tpu.memory_space<vmem>>, vector<8x128xf32>,
    return
  }
  func.func @transform_0(%arg0: i32) -> (i32, i32) {
    %c0_i32 = arith.constant 0 : i32
    %c0_i32_0 = arith.constant 0 : i32
    return %arg0, %c0_i32 : i32, i32
  }
  func.func @transform_1(%arg0: i32) -> (i32, i32) {
    %c0_i32 = arith.constant 0 : i32
    %c0_i32_0 = arith.constant 0 : i32
    return %arg0, %c0_i32 : i32, i32
  }
  func.func @transform_2(%arg0: i32) -> (i32, i32) {
    %c0_i32 = arith.constant 0 : i32
    %c0_i32_0 = arith.constant 0 : i32
    %c0_i32_1 = arith.constant 0 : i32
    return %c0_i32, %c0_i32_0 : i32, i32
  }
  func.func @transform_3(%arg0: i32) -> (i32, i32) {
    %c0_i32 = arith.constant 0 : i32
    %c0_i32_0 = arith.constant 0 : i32
    %c0_i32_1 = arith.constant 0 : i32
    return %c0_i32, %c0_i32_0 : i32, i32
  }
  func.func @transform_4(%arg0: i32) -> (i32, i32) {
    %c0_i32 = arith.constant 0 : i32
    %c0_i32_0 = arith.constant 0 : i32
    %c0_i32_1 = arith.constant 0 : i32
    return %c0_i32, %c0_i32_0 : i32, i32
  }
  func.func @transform_5(%arg0: i32) -> (i32, i32) {
    %c0_i32 = arith.constant 0 : i32
    %c0_i32_0 = arith.constant 0 : i32
    %c0_i32_1 = arith.constant 0 : i32
    return %c0_i32, %c0_i32_0 : i32, i32
  }
  func.func @transform_6(%arg0: i32) -> (i32, i32) {
    %c0_i32 = arith.constant 0 : i32
    %c0_i32_0 = arith.constant 0 : i32
    %c0_i32_1 = arith.constant 0 : i32
    return %c0_i32, %c0_i32_0 : i32, i32
  }
  func.func @transform_7(%arg0: i32) -> (i32, i32) {
    %c0_i32 = arith.constant 0 : i32
    %c0_i32_0 = arith.constant 0 : i32
    %c0_i32_1 = arith.constant 0 : i32
    return %c0_i32, %c0_i32_0 : i32, i32
  }
  func.func @transform_8(%arg0: i32) -> (i32, i32) {
    %c0_i32 = arith.constant 0 : i32
    %c0_i32_0 = arith.constant 0 : i32
    return %arg0, %c0_i32 : i32, i32
  }
}

</mosaic_0001>

<llo_original>
// kernel: tpu_custom_call.1
$region0: #{tpu_custom_call.1}
  #allocation0 [shape = 'u32[]', space=smem, size = 0x4, offset = 0x4, fixed_abs, tag = 'smem constant byte address 0x4 - core index']
  #allocation1 [shape = 'u32[144,128]{1,0:T(1,128)}', space=vmem, size = 0x12000, scoped, tag = 'internal scratch']
  %s0 = inlined_call_operand.hbm [shape: bf16[16,128], index: 0, kind: input, shape index: {}]
  %s1 = inlined_call_operand.hbm [shape: f32[16,128], index: 1, kind: input, shape index: {}]
  %s2 = inlined_call_operand.hbm [shape: bf16[128,128], index: 2, kind: input, shape index: {}]
  %s3 = inlined_call_operand.vmem [shape: f32[1,128], index: 3, kind: input, shape index: {}]
  %s4 = inlined_call_operand.hbm [shape: bf16[128,128], index: 4, kind: input, shape index: {}]
  %s5 = inlined_call_operand.vmem [shape: f32[1,128], index: 5, kind: input, shape index: {}]
  %s6 = inlined_call_operand.hbm [shape: bf16[128,128], index: 6, kind: input, shape index: {}]
  %s7 = inlined_call_operand.vmem [shape: f32[1,128], index: 7, kind: input, shape index: {}]
  %s8 = inlined_call_operand.hbm [shape: f32[16,128], index: 8, kind: output, shape index: {}]
  %s9 = sld [smem:[#allocation0]]
  $region85: #{tpu_custom_call.1} parent=0
    _
  %s11 = ssub.s32 1, %s9
  %s12 = scalar_select 0, %s11, %s9
  $region1: #{tpu_custom_call.1} parent=0
    #allocation2 [shape = 'u8[4096]{0}', space=vmem, size = 0x1000, scoped, tag = 'input window, operand 0']
    #allocation3 [shape = 's32[2]{0}', space=sflag, size = 0x8, scoped, tag = 'scoped memory for tpu_custom_call.1']
    #allocation4 [shape = 's32[2]{0}', space=sflag, size = 0x8, scoped, tag = 'scoped memory for tpu_custom_call.1']
    #allocation5 [shape = 'u8[8192]{0}', space=vmem, size = 0x2000, scoped, tag = 'input window, operand 1']
    #allocation6 [shape = 's32[2]{0}', space=sflag, size = 0x8, scoped, tag = 'scoped memory for tpu_custom_call.1']
    #allocation7 [shape = 'u8[32768]{0}', space=vmem, size = 0x8000, scoped, tag = 'input window, operand 2, single buffered']
    #allocation8 [shape = 'u8[32768]{0}', space=vmem, size = 0x8000, scoped, tag = 'input window, operand 4, single buffered']
    #allocation9 [shape = 's32[1]{0}', space=sflag, size = 0x4, scoped, tag = 'scoped memory for tpu_custom_call.1']
    #allocation10 [shape = 'u8[32768]{0}', space=vmem, size = 0x8000, scoped, tag = 'input window, operand 6, single buffered']
    #allocation11 [shape = 'u8[8192]{0}', space=vmem, size = 0x2000, scoped, tag = 'output window, operand 0']
    %13 = vsyncpa [#allocation3], 0
    %s14 = scalar_lea.sflag [#allocation3], 1
    %15 = vsyncpa %s14, 0
    %16 = vsyncpa [#allocation6], 0
    %s17 = scalar_lea.sflag [#allocation6], 1
    %18 = vsyncpa %s17, 0
    %19 = vsyncpa [#allocation9], 0
    %20 = vsyncpa [#allocation4], 0
    %s21 = scalar_lea.sflag [#allocation4], 1
    %22 = vsyncpa %s21, 0
    loop: start=0, step=1, limit=4
    $region2: #{tpu_custom_call.1} parent=1 // loop_pre_header
      _
    $region3: #{tpu_custom_call.1} parent=1 // loop_header
      %s24 = sphi 0, %s28
      %p25 = scmp.ge.s32.totalorder %s24, 4
      %s34 = sphi 0, %s36
      %s37 = sphi 0, %s34
      %s38 = sphi 0, %s37
      %s54 = sphi 0, %s38
      %s60 = sphi 0, %s62
      %s63 = sphi 0, %s60
      %s64 = sphi 0, %s63
      %s80 = sphi 0, %s64
      %s84 = sphi 0, %s84
      %s86 = sphi 0, %s84
      %s87 = sphi 0, %s86
      %s101 = sphi 0, %s87
      %s105 = sphi 0, %s105
      %s107 = sphi 0, %s105
      %s108 = sphi 0, %s107
      %s122 = sphi 0, %s108
      %s126 = sphi 0, %s126
      %s128 = sphi 0, %s126
      %s129 = sphi 0, %s128
      %s143 = sphi 0, %s129
      %s147 = sphi 0, %s147
      %s149 = sphi 0, %s147
      %s150 = sphi 0, %s149
      %s164 = sphi 0, %s150
      %s168 = sphi 0, %s168
      %s170 = sphi 0, %s168
      %s171 = sphi 0, %s170
      %s185 = sphi 0, %s171
      %s189 = sphi 0, %s189
      %s191 = sphi 0, %s189
      %s192 = sphi 0, %s191
      %s206 = sphi 0, %s192
      %s212 = sphi 0, %s214
      %s215 = sphi 0, %s212
      %s216 = sphi 0, %s215
      %s232 = sphi 0, %s216
    $region4: #{tpu_custom_call.1} parent=1 // loop_header_branch
      %27 = sbr.rel (%p25) target = $region8
    $region5: #{tpu_custom_call.1} parent=1 // loop_body
      %s29 = ssub.s32 %s24, 1
      %s30 = ssub.s32 %s24, 2
      %s31 = sadd.s32 %s24, 1
      %s32 = ssub.s32 %s24, %s31
      %p33 = scmp.eq.s32.totalorder %s32, 0
      %s35 = sadd.s32 %s34, 1
      %s36 = scalar_select %p33, %s34, %s35
      %p39 = pneg %p33
      %p40 = scmp.eq.s32.totalorder %s24, 1
      %p41 = por %p39, %p40
      %p42 = scmp.ne.s32.totalorder %s34, %s37
      %p43 = scmp.eq.s32.totalorder %s24, 0
      %p44 = por %p42, %p43
      %p45 = scmp.ne.s32.totalorder %s34, %s37
      %p46 = scmp.eq.s32.totalorder %s29, 1
      %p47 = por %p45, %p46
      %p48 = scmp.ne.s32.totalorder %s37, %s38
      %p49 = scmp.eq.s32.totalorder %s29, 0
      %p50 = por %p48, %p49
      %p51 = scmp.ne.s32.totalorder %s37, %s38
      %p52 = scmp.eq.s32.totalorder %s30, 1
      %p53 = por %p51, %p52
      %p55 = scmp.ne.s32.totalorder %s38, %s54
      %p56 = scmp.eq.s32.totalorder %s30, 0
      %p57 = por %p55, %p56
      %s58 = ssub.s32 %s24, %s31
      %p59 = scmp.eq.s32.totalorder %s58, 0
      %s61 = sadd.s32 %s60, 1
      %s62 = scalar_select %p59, %s60, %s61
      %p65 = pneg %p59
      %p66 = scmp.eq.s32.totalorder %s24, 1
      %p67 = por %p65, %p66
      %p68 = scmp.ne.s32.totalorder %s60, %s63
      %p69 = scmp.eq.s32.totalorder %s24, 0
      %p70 = por %p68, %p69
      %p71 = scmp.ne.s32.totalorder %s60, %s63
      %p72 = scmp.eq.s32.totalorder %s29, 1
      %p73 = por %p71, %p72
      %p74 = scmp.ne.s32.totalorder %s63, %s64
      %p75 = scmp.eq.s32.totalorder %s29, 0
      %p76 = por %p74, %p75
      %p77 = scmp.ne.s32.totalorder %s63, %s64
      %p78 = scmp.eq.s32.totalorder %s30, 1
      %p79 = por %p77, %p78
      %p81 = scmp.ne.s32.totalorder %s64, %s80
      %p82 = scmp.eq.s32.totalorder %s30, 0
      %p83 = por %p81, %p82
      %s85 = sadd.s32 %s84, 1
      %p88 = scmp.eq.s32.totalorder %s24, 1
      %p89 = scmp.ne.s32.totalorder %s84, %s86
      %p90 = scmp.eq.s32.totalorder %s24, 0
      %p91 = por %p89, %p90
      %p92 = scmp.ne.s32.totalorder %s84, %s86
      %p93 = scmp.eq.s32.totalorder %s29, 1
      %p94 = por %p92, %p93
      %p95 = scmp.ne.s32.totalorder %s86, %s87
      %p96 = scmp.eq.s32.totalorder %s29, 0
      %p97 = por %p95, %p96
      %p98 = scmp.ne.s32.totalorder %s86, %s87
      %p99 = scmp.eq.s32.totalorder %s30, 1
      %p100 = por %p98, %p99
      %p102 = scmp.ne.s32.totalorder %s87, %s101
      %p103 = scmp.eq.s32.totalorder %s30, 0
      %p104 = por %p102, %p103
      %s106 = sadd.s32 %s105, 1
      %p109 = scmp.eq.s32.totalorder %s24, 1
      %p110 = scmp.ne.s32.totalorder %s105, %s107
      %p111 = scmp.eq.s32.totalorder %s24, 0
      %p112 = por %p110, %p111
      %p113 = scmp.ne.s32.totalorder %s105, %s107
      %p114 = scmp.eq.s32.totalorder %s29, 1
      %p115 = por %p113, %p114
      %p116 = scmp.ne.s32.totalorder %s107, %s108
      %p117 = scmp.eq.s32.totalorder %s29, 0
      %p118 = por %p116, %p117
      %p119 = scmp.ne.s32.totalorder %s107, %s108
      %p120 = scmp.eq.s32.totalorder %s30, 1
      %p121 = por %p119, %p120
      %p123 = scmp.ne.s32.totalorder %s108, %s122
      %p124 = scmp.eq.s32.totalorder %s30, 0
      %p125 = por %p123, %p124
      %s127 = sadd.s32 %s126, 1
      %p130 = scmp.eq.s32.totalorder %s24, 1
      %p131 = scmp.ne.s32.totalorder %s126, %s128
      %p132 = scmp.eq.s32.totalorder %s24, 0
      %p133 = por %p131, %p132
      %p134 = scmp.ne.s32.totalorder %s126, %s128
      %p135 = scmp.eq.s32.totalorder %s29, 1
      %p136 = por %p134, %p135
      %p137 = scmp.ne.s32.totalorder %s128, %s129
      %p138 = scmp.eq.s32.totalorder %s29, 0
      %p139 = por %p137, %p138
      %p140 = scmp.ne.s32.totalorder %s128, %s129
      %p141 = scmp.eq.s32.totalorder %s30, 1
      %p142 = por %p140, %p141
      %p144 = scmp.ne.s32.totalorder %s129, %s143
      %p145 = scmp.eq.s32.totalorder %s30, 0
      %p146 = por %p144, %p145
      %s148 = sadd.s32 %s147, 1
      %p151 = scmp.eq.s32.totalorder %s24, 1
      %p152 = scmp.ne.s32.totalorder %s147, %s149
      %p153 = scmp.eq.s32.totalorder %s24, 0
      %p154 = por %p152, %p153
      %p155 = scmp.ne.s32.totalorder %s147, %s149
      %p156 = scmp.eq.s32.totalorder %s29, 1
      %p157 = por %p155, %p156
      %p158 = scmp.ne.s32.totalorder %s149, %s150
      %p159 = scmp.eq.s32.totalorder %s29, 0
      %p160 = por %p158, %p159
      %p161 = scmp.ne.s32.totalorder %s149, %s150
      %p162 = scmp.eq.s32.totalorder %s30, 1
      %p163 = por %p161, %p162
      %p165 = scmp.ne.s32.totalorder %s150, %s164
      %p166 = scmp.eq.s32.totalorder %s30, 0
      %p167 = por %p165, %p166
      %s169 = sadd.s32 %s168, 1
      %p172 = scmp.eq.s32.totalorder %s24, 1
      %p173 = scmp.ne.s32.totalorder %s168, %s170
      %p174 = scmp.eq.s32.totalorder %s24, 0
      %p175 = por %p173, %p174
      %p176 = scmp.ne.s32.totalorder %s168, %s170
      %p177 = scmp.eq.s32.totalorder %s29, 1
      %p178 = por %p176, %p177
      %p179 = scmp.ne.s32.totalorder %s170, %s171
      %p180 = scmp.eq.s32.totalorder %s29, 0
      %p181 = por %p179, %p180
      %p182 = scmp.ne.s32.totalorder %s170, %s171
      %p183 = scmp.eq.s32.totalorder %s30, 1
      %p184 = por %p182, %p183
      %p186 = scmp.ne.s32.totalorder %s171, %s185
      %p187 = scmp.eq.s32.totalorder %s30, 0
      %p188 = por %p186, %p187
      %s190 = sadd.s32 %s189, 1
      %p193 = scmp.eq.s32.totalorder %s24, 1
      %p194 = scmp.ne.s32.totalorder %s189, %s191
      %p195 = scmp.eq.s32.totalorder %s24, 0
      %p196 = por %p194, %p195
      %p197 = scmp.ne.s32.totalorder %s189, %s191
      %p198 = scmp.eq.s32.totalorder %s29, 1
      %p199 = por %p197, %p198
      %p200 = scmp.ne.s32.totalorder %s191, %s192
      %p201 = scmp.eq.s32.totalorder %s29, 0
      %p202 = por %p200, %p201
      %p203 = scmp.ne.s32.totalorder %s191, %s192
      %p204 = scmp.eq.s32.totalorder %s30, 1
      %p205 = por %p203, %p204
      %p207 = scmp.ne.s32.totalorder %s192, %s206
      %p208 = scmp.eq.s32.totalorder %s30, 0
      %p209 = por %p207, %p208
      %s210 = ssub.s32 %s24, %s31
      %p211 = scmp.eq.s32.totalorder %s210, 0
      %s213 = sadd.s32 %s212, 1
      %s214 = scalar_select %p211, %s212, %s213
      %p217 = pneg %p211
      %p218 = scmp.eq.s32.totalorder %s24, 1
      %p219 = por %p217, %p218
      %p220 = scmp.ne.s32.totalorder %s212, %s215
      %p221 = scmp.eq.s32.totalorder %s24, 0
      %p222 = por %p220, %p221
      %p223 = scmp.ne.s32.totalorder %s212, %s215
      %p224 = scmp.eq.s32.totalorder %s29, 1
      %p225 = por %p223, %p224
      %p226 = scmp.ne.s32.totalorder %s215, %s216
      %p227 = scmp.eq.s32.totalorder %s29, 0
      %p228 = por %p226, %p227
      %p229 = scmp.ne.s32.totalorder %s215, %s216
      %p230 = scmp.eq.s32.totalorder %s30, 1
      %p231 = por %p229, %p230
      %p233 = scmp.ne.s32.totalorder %s216, %s232
      %p234 = scmp.eq.s32.totalorder %s30, 0
      %p235 = por %p233, %p234
      %p236 = scmp.le.s32.totalorder 1, %s24
      %p237 = scmp.lt.s32.totalorder %s24, 3
      %p238 = pnand %p236, %p237
      %p239 = pneg %p238
      // Predicated region
      $region9: #{tpu_custom_call.1} parent=5 // pred_check
        _
      $region10: #{tpu_custom_call.1} parent=5 // pred_check_branch
        %241 = sbr.rel (%p238) target = $region12
      $region11: #{tpu_custom_call.1} parent=5 // pred_region
        %s242 = ssub.s32 %s24, 1
        // Predicated region
        $region13: #{tpu_custom_call.1} parent=11 // pred_check
          %p243 = pneg %p97
        $region14: #{tpu_custom_call.1} parent=11 // pred_check_branch
          %245 = sbr.rel (%p243) target = $region16
        $region15: #{tpu_custom_call.1} parent=11 // pred_region
          %s247 = ssub.s32 1024, 1024
          %248 = vsyncadd [#allocation6], %s247
          %s249 = sshll.u32 [#allocation7], 4
          %s250 = int_to_ptr.vmem [resolvable:$true] %s249
          %255 = dma.hbm_to_vmem [thread:$0]  %s2, 1024, %s250, [#allocation6], 64, 64, 4
        $region16: #{tpu_custom_call.1} parent=11 // pred_fallthru
          _
        // Predicated region
        $region17: #{tpu_custom_call.1} parent=11 // pred_check
          %p256 = pneg %p118
        $region18: #{tpu_custom_call.1} parent=11 // pred_check_branch
          %258 = sbr.rel (%p256) target = $region20
        $region19: #{tpu_custom_call.1} parent=11 // pred_region
          _
        $region20: #{tpu_custom_call.1} parent=11 // pred_fallthru
          _
        // Predicated region
        $region21: #{tpu_custom_call.1} parent=11 // pred_check
          %p259 = pneg %p139
        $region22: #{tpu_custom_call.1} parent=11 // pred_check_branch
          %261 = sbr.rel (%p259) target = $region24
        $region23: #{tpu_custom_call.1} parent=11 // pred_region
          %s263 = ssub.s32 1024, 1024
          %264 = vsyncadd [#allocation9], %s263
          %s265 = sshll.u32 [#allocation8], 4
          %s266 = int_to_ptr.vmem [resolvable:$true] %s265
          %271 = dma.hbm_to_vmem [thread:$0]  %s4, 1024, %s266, [#allocation9], 64, 64, 4
        $region24: #{tpu_custom_call.1} parent=11 // pred_fallthru
          _
        // Predicated region
        $region25: #{tpu_custom_call.1} parent=11 // pred_check
          %p272 = pneg %p160
        $region26: #{tpu_custom_call.1} parent=11 // pred_check_branch
          %274 = sbr.rel (%p272) target = $region28
        $region27: #{tpu_custom_call.1} parent=11 // pred_region
          _
        $region28: #{tpu_custom_call.1} parent=11 // pred_fallthru
          _
        // Predicated region
        $region29: #{tpu_custom_call.1} parent=11 // pred_check
          %p275 = pneg %p181
        $region30: #{tpu_custom_call.1} parent=11 // pred_check_branch
          %277 = sbr.rel (%p275) target = $region32
        $region31: #{tpu_custom_call.1} parent=11 // pred_region
          %s279 = ssub.s32 1024, 1024
          %280 = vsyncadd [#allocation9], %s279
          %s281 = sshll.u32 [#allocation10], 4
          %s282 = int_to_ptr.vmem [resolvable:$true] %s281
          %287 = dma.hbm_to_vmem [thread:$0]  %s6, 1024, %s282, [#allocation9], 64, 64, 4
        $region32: #{tpu_custom_call.1} parent=11 // pred_fallthru
          _
        // Predicated region
        $region33: #{tpu_custom_call.1} parent=11 // pred_check
          %p288 = pneg %p202
        $region34: #{tpu_custom_call.1} parent=11 // pred_check_branch
          %290 = sbr.rel (%p288) target = $region36
        $region35: #{tpu_custom_call.1} parent=11 // pred_region
          _
        $region36: #{tpu_custom_call.1} parent=11 // pred_fallthru
          _
      $region12: #{tpu_custom_call.1} parent=5 // pred_fallthru
        _
      %p291 = scmp.lt.s32.totalorder %s24, 2
      // Predicated region
      $region37: #{tpu_custom_call.1} parent=5 // pred_check
        %p292 = pneg %p291
      $region38: #{tpu_custom_call.1} parent=5 // pred_check_branch
        %294 = sbr.rel (%p292) target = $region40
      $region39: #{tpu_custom_call.1} parent=5 // pred_region
        // Predicated region
        $region41: #{tpu_custom_call.1} parent=39 // pred_check
          %p295 = pneg %p44
        $region42: #{tpu_custom_call.1} parent=39 // pred_check_branch
          %297 = sbr.rel (%p295) target = $region44
        $region43: #{tpu_custom_call.1} parent=39 // pred_region
          %s298 = sand.u32 %s34, 1
          %s299 = scalar_lea.sflag [#allocation3], %s298
          %s300 = sand.u32 %s34, 1
          %s301 = smul.addr %s300, 4
          %s302 = scalar_lea.vmem [#allocation2], %s301
          %s304 = ssub.s32 64, 64
          %305 = vsyncadd %s299, %s304
          %s306 = smul.addr %s24, 64
          %s307 = scalar_lea.hbm %s0, %s306
          %s309 = sshll.u32 %s302, 4
          %s310 = int_to_ptr.vmem [resolvable:$true] %s309
          %312 = dma.hbm_to_vmem [thread:$0]  %s307, 64, %s310, %s299
        $region44: #{tpu_custom_call.1} parent=39 // pred_fallthru
          _
        // Predicated region
        $region45: #{tpu_custom_call.1} parent=39 // pred_check
          %p313 = pneg %p70
        $region46: #{tpu_custom_call.1} parent=39 // pred_check_branch
          %315 = sbr.rel (%p313) target = $region48
        $region47: #{tpu_custom_call.1} parent=39 // pred_region
          %s316 = sand.u32 %s24, 1
          %s317 = scalar_lea.sflag [#allocation6], %s316
          %s318 = sand.u32 %s60, 1
          %s319 = smul.addr %s318, 8
          %s320 = scalar_lea.vmem [#allocation5], %s319
          %s322 = ssub.s32 128, 128
          %323 = vsyncadd %s317, %s322
          %s324 = smul.addr %s24, 128
          %s325 = scalar_lea.hbm %s1, %s324
          %s327 = sshll.u32 %s320, 4
          %s328 = int_to_ptr.vmem [resolvable:$true] %s327
          %330 = dma.hbm_to_vmem [thread:$0]  %s325, 128, %s328, %s317
        $region48: #{tpu_custom_call.1} parent=39 // pred_fallthru
          _
      $region40: #{tpu_custom_call.1} parent=5 // pred_fallthru
        _
      %p331 = scmp.le.s32.totalorder 1, %s24
      %p332 = scmp.lt.s32.totalorder %s24, 3
      %p333 = pnand %p331, %p332
      %p334 = pneg %p333
      // Predicated region
      $region49: #{tpu_custom_call.1} parent=5 // pred_check
        _
      $region50: #{tpu_custom_call.1} parent=5 // pred_check_branch
        %336 = sbr.rel (%p333) target = $region52
      $region51: #{tpu_custom_call.1} parent=5 // pred_region
        %s337 = ssub.s32 %s24, 1
        %s338 = sand.u32 %s37, 1
        %s339 = scalar_lea.sflag [#allocation3], %s338
        %s340 = sand.u32 %s37, 1
        %s341 = smul.addr %s340, 4
        %s342 = scalar_lea.vmem [#allocation2], %s341
        // Predicated region
        $region53: #{tpu_custom_call.1} parent=51 // pred_check
          %p343 = pneg %p50
        $region54: #{tpu_custom_call.1} parent=51 // pred_check_branch
          %345 = sbr.rel (%p343) target = $region56
        $region55: #{tpu_custom_call.1} parent=51 // pred_region
          %346 = dma.done %s339, 64
        $region56: #{tpu_custom_call.1} parent=51 // pred_fallthru
          _
        %s347 = sand.u32 %s29, 1
        %s348 = scalar_lea.sflag [#allocation6], %s347
        %s349 = sand.u32 %s63, 1
        %s350 = smul.addr %s349, 8
        %s351 = scalar_lea.vmem [#allocation5], %s350
        // Predicated region
        $region57: #{tpu_custom_call.1} parent=51 // pred_check
          %p352 = pneg %p76
        $region58: #{tpu_custom_call.1} parent=51 // pred_check_branch
          %354 = sbr.rel (%p352) target = $region60
        $region59: #{tpu_custom_call.1} parent=51 // pred_region
          %355 = dma.done %s348, 128
        $region60: #{tpu_custom_call.1} parent=51 // pred_fallthru
          _
        // Predicated region
        $region61: #{tpu_custom_call.1} parent=51 // pred_check
          %p356 = pneg %p97
        $region62: #{tpu_custom_call.1} parent=51 // pred_check_branch
          %358 = sbr.rel (%p356) target = $region64
        $region63: #{tpu_custom_call.1} parent=51 // pred_region
          %359 = dma.done [#allocation6], 1024
        $region64: #{tpu_custom_call.1} parent=51 // pred_fallthru
          _
        // Predicated region
        $region65: #{tpu_custom_call.1} parent=51 // pred_check
          %p360 = pneg %p139
        $region66: #{tpu_custom_call.1} parent=51 // pred_check_branch
          %362 = sbr.rel (%p360) target = $region68
        $region67: #{tpu_custom_call.1} parent=51 // pred_region
          %363 = dma.done [#allocation9], 1024
        $region68: #{tpu_custom_call.1} parent=51 // pred_fallthru
          _
        // Predicated region
        $region69: #{tpu_custom_call.1} parent=51 // pred_check
          %p364 = pneg %p181
        $region70: #{tpu_custom_call.1} parent=51 // pred_check_branch
          %366 = sbr.rel (%p364) target = $region72
        $region71: #{tpu_custom_call.1} parent=51 // pred_region
          %367 = dma.done [#allocation9], 1024
        $region72: #{tpu_custom_call.1} parent=51 // pred_fallthru
          _
        %s368 = sand.u32 %s37, 1
        %s369 = scalar_lea.sflag [#allocation3], %s368
        %s370 = sand.u32 %s37, 1
        %s371 = smul.addr %s370, 4
        %s372 = scalar_lea.vmem [#allocation2], %s371
        %p373 = pneg %p50
        %p374 = pneg %p47
        %s375 = sand.u32 %s29, 1
        %s376 = scalar_lea.sflag [#allocation6], %s375
        %s377 = sand.u32 %s63, 1
        %s378 = smul.addr %s377, 8
        %s379 = scalar_lea.vmem [#allocation5], %s378
        %p380 = pneg %p76
        %p381 = pneg %p73
        %p382 = pneg %p97
        %p383 = pneg %p94
        %p384 = pneg %p118
        %p385 = pneg %p115
        %p386 = pneg %p139
        %p387 = pneg %p136
        %p388 = pneg %p160
        %p389 = pneg %p157
        %p390 = pneg %p181
        %p391 = pneg %p178
        %p392 = pneg %p202
        %p393 = pneg %p199
        %p394 = pneg %p228
        %p395 = pneg %p225
        %s396 = sand.u32 %s215, 1
        %s397 = scalar_lea.sflag [#allocation4], %s396
        %s398 = sand.u32 %s215, 1
        %s399 = smul.addr %s398, 8
        %s400 = scalar_lea.vmem [#allocation11], %s399
        %v402 = vld [vmem:[%s342] sm:$0xf]
        %v403 = vld [vmem:[#allocation7] sm:$0xf]
        %v404 = vld [vmem:[#allocation7 + $0x4] sm:$0xf]
        %v405 = vld [vmem:[#allocation7 + $0x8] sm:$0xf]
        %v406 = vld [vmem:[#allocation7 + $0xc] sm:$0xf]
        %v407 = vld [vmem:[#allocation7 + $0x10] sm:$0xf]
        %v408 = vld [vmem:[#allocation7 + $0x14] sm:$0xf]
        %v409 = vld [vmem:[#allocation7 + $0x18] sm:$0xf]
        %v410 = vld [vmem:[#allocation7 + $0x1c] sm:$0xf]
        %v411 = vld [vmem:[#allocation7 + $0x20] sm:$0xf]
        %v412 = vld [vmem:[#allocation7 + $0x24] sm:$0xf]
        %v413 = vld [vmem:[#allocation7 + $0x28] sm:$0xf]
        %v414 = vld [vmem:[#allocation7 + $0x2c] sm:$0xf]
        %v415 = vld [vmem:[#allocation7 + $0x30] sm:$0xf]
        %v416 = vld [vmem:[#allocation7 + $0x34] sm:$0xf]
        %v417 = vld [vmem:[#allocation7 + $0x38] sm:$0xf]
        %v418 = vld [vmem:[#allocation7 + $0x3c] sm:$0xf]
        %v419 = vld [vmem:[%s351] sm:$0xff]
        %v436 = vunpack.c.l.b16 %v403
        %v437 = vunpack.c.l.b16 %v404
        %v438 = vunpack.c.l.b16 %v405
        %v439 = vunpack.c.l.b16 %v406
        %v440 = vunpack.c.l.b16 %v407
        %v441 = vunpack.c.l.b16 %v408
        %v442 = vunpack.c.l.b16 %v409
        %v443 = vunpack.c.l.b16 %v410
        %v444 = vunpack.c.l.b16 %v411
        %v445 = vunpack.c.l.b16 %v412
        %v446 = vunpack.c.l.b16 %v413
        %v447 = vunpack.c.l.b16 %v414
        %v448 = vunpack.c.l.b16 %v415
        %v449 = vunpack.c.l.b16 %v416
        %v450 = vunpack.c.l.b16 %v417
        %v451 = vunpack.c.l.b16 %v418
        %v452 = vpack.c.b16 %v437, %v436
        %v453 = vpack.c.b16 %v439, %v438
        %v454 = vpack.c.b16 %v441, %v440
        %v455 = vpack.c.b16 %v443, %v442
        %v456 = vpack.c.b16 %v445, %v444
        %v457 = vpack.c.b16 %v447, %v446
        %v458 = vpack.c.b16 %v449, %v448
        %v459 = vpack.c.b16 %v451, %v450
        %468 = vmatprep.subr.bf16.mxu0 0
        %469 = vmatpush1.bf16.msra.mxu0 %v452
        %470 = vmatprep.subr.bf16.mxu0 0
        %471 = vmatpush1.bf16.msra.mxu0 %v453
        %472 = vmatprep.subr.bf16.mxu0 0
        %473 = vmatpush1.bf16.msra.mxu0 %v454
        %474 = vmatprep.subr.bf16.mxu0 0
        %475 = vmatpush1.bf16.msra.mxu0 %v455
        %476 = vmatprep.subr.bf16.mxu0 0
        %477 = vmatpush1.bf16.msra.mxu0 %v456
        %478 = vmatprep.subr.bf16.mxu0 0
        %479 = vmatpush1.bf16.msra.mxu0 %v457
        %480 = vmatprep.subr.bf16.mxu0 0
        %481 = vmatpush1.bf16.msra.mxu0 %v458
        %482 = vmatprep.subr.bf16.mxu0 0
        %483 = vmatpush1.bf16.msra.mxu0 %v459
        %484 = vmatprep.subr.bf16.mxu0 0
        %485 = vmatpush1.bf16.msra.mxu0 0
        %486 = vmatprep.subr.bf16.mxu0 0
        %487 = vmatpush1.bf16.msra.mxu0 0
        %488 = vmatprep.subr.bf16.mxu0 0
        %489 = vmatpush1.bf16.msra.mxu0 0
        %490 = vmatprep.subr.bf16.mxu0 0
        %491 = vmatpush1.bf16.msra.mxu0 0
        %492 = vmatprep.subr.bf16.mxu0 0
        %493 = vmatpush1.bf16.msra.mxu0 0
        %494 = vmatprep.subr.bf16.mxu0 0
        %495 = vmatpush1.bf16.msra.mxu0 0
        %496 = vmatprep.subr.bf16.mxu0 0
        %497 = vmatpush1.bf16.msra.mxu0 0
        %498 = vmatprep.subr.bf16.mxu0 0
        %499 = vmatpush1.bf16.msra.mxu0 0
        %500 = vmatprep.mubr.bf16.mxu0 0
        %501 = vmatmul.mubr.bf16.gmra.mrb[0].mxu0 %v402
        %v502 = vpop.f32.mrb[0].mxu0
        %v503 = vadd.f32 %v419, %v502
        %v504 = vpop.f32.mrb[0].mxu0
        %v505 = vpop.f32.mrb[0].mxu0
        %v506 = vpop.f32.mrb[0].mxu0
        %507 = vdwg.mxu0
        %v508 = vld [vmem:[%s3] sm:$0x1]
        %v510 = vlaneseq
        %v511 = vshrl.u32 %v510, 7
        %v512 = vsub.s32 0, %v511
        %v513 = vrot.slane %v508, %v512
        %v515 = vadd.f32 %v503, %v513
        %v516 = vmax.f32 %v515, 0.0
        %v517 = vpack.c.bf16 %v516, %v516
        %v518 = vld [vmem:[#allocation8] sm:$0xf]
        %v519 = vld [vmem:[#allocation8 + $0x4] sm:$0xf]
        %v520 = vld [vmem:[#allocation8 + $0x8] sm:$0xf]
        %v521 = vld [vmem:[#allocation8 + $0xc] sm:$0xf]
        %v522 = vld [vmem:[#allocation8 + $0x10] sm:$0xf]
        %v523 = vld [vmem:[#allocation8 + $0x14] sm:$0xf]
        %v524 = vld [vmem:[#allocation8 + $0x18] sm:$0xf]
        %v525 = vld [vmem:[#allocation8 + $0x1c] sm:$0xf]
        %v526 = vld [vmem:[#allocation8 + $0x20] sm:$0xf]
        %v527 = vld [vmem:[#allocation8 + $0x24] sm:$0xf]
        %v528 = vld [vmem:[#allocation8 + $0x28] sm:$0xf]
        %v529 = vld [vmem:[#allocation8 + $0x2c] sm:$0xf]
        %v530 = vld [vmem:[#allocation8 + $0x30] sm:$0xf]
        %v531 = vld [vmem:[#allocation8 + $0x34] sm:$0xf]
        %v532 = vld [vmem:[#allocation8 + $0x38] sm:$0xf]
        %v533 = vld [vmem:[#allocation8 + $0x3c] sm:$0xf]
        %v534 = vld [vmem:[%s5] sm:$0x1]
        %v536 = vlaneseq
        %v537 = vshrl.u32 %v536, 7
        %v538 = vsub.s32 0, %v537
        %v539 = vrot.slane %v534, %v538
        %v557 = vunpack.c.l.b16 %v518
        %v558 = vunpack.c.l.b16 %v519
        %v559 = vunpack.c.l.b16 %v520
        %v560 = vunpack.c.l.b16 %v521
        %v561 = vunpack.c.l.b16 %v522
        %v562 = vunpack.c.l.b16 %v523
        %v563 = vunpack.c.l.b16 %v524
        %v564 = vunpack.c.l.b16 %v525
        %v565 = vunpack.c.l.b16 %v526
        %v566 = vunpack.c.l.b16 %v527
        %v567 = vunpack.c.l.b16 %v528
        %v568 = vunpack.c.l.b16 %v529
        %v569 = vunpack.c.l.b16 %v530
        %v570 = vunpack.c.l.b16 %v531
        %v571 = vunpack.c.l.b16 %v532
        %v572 = vunpack.c.l.b16 %v533
        %v573 = vpack.c.b16 %v558, %v557
        %v574 = vpack.c.b16 %v560, %v559
        %v575 = vpack.c.b16 %v562, %v561
        %v576 = vpack.c.b16 %v564, %v563
        %v577 = vpack.c.b16 %v566, %v565
        %v578 = vpack.c.b16 %v568, %v567
        %v579 = vpack.c.b16 %v570, %v569
        %v580 = vpack.c.b16 %v572, %v571
        %589 = vmatprep.subr.bf16.mxu0 0
        %590 = vmatpush1.bf16.msra.mxu0 %v573
        %591 = vmatprep.subr.bf16.mxu0 0
        %592 = vmatpush1.bf16.msra.mxu0 %v574
        %593 = vmatprep.subr.bf16.mxu0 0
        %594 = vmatpush1.bf16.msra.mxu0 %v575
        %595 = vmatprep.subr.bf16.mxu0 0
        %596 = vmatpush1.bf16.msra.mxu0 %v576
        %597 = vmatprep.subr.bf16.mxu0 0
        %598 = vmatpush1.bf16.msra.mxu0 %v577
        %599 = vmatprep.subr.bf16.mxu0 0
        %600 = vmatpush1.bf16.msra.mxu0 %v578
        %601 = vmatprep.subr.bf16.mxu0 0
        %602 = vmatpush1.bf16.msra.mxu0 %v579
        %603 = vmatprep.subr.bf16.mxu0 0
        %604 = vmatpush1.bf16.msra.mxu0 %v580
        %605 = vmatprep.subr.bf16.mxu0 0
        %606 = vmatpush1.bf16.msra.mxu0 0
        %607 = vmatprep.subr.bf16.mxu0 0
        %608 = vmatpush1.bf16.msra.mxu0 0
        %609 = vmatprep.subr.bf16.mxu0 0
        %610 = vmatpush1.bf16.msra.mxu0 0
        %611 = vmatprep.subr.bf16.mxu0 0
        %612 = vmatpush1.bf16.msra.mxu0 0
        %613 = vmatprep.subr.bf16.mxu0 0
        %614 = vmatpush1.bf16.msra.mxu0 0
        %615 = vmatprep.subr.bf16.mxu0 0
        %616 = vmatpush1.bf16.msra.mxu0 0
        %617 = vmatprep.subr.bf16.mxu0 0
        %618 = vmatpush1.bf16.msra.mxu0 0
        %619 = vmatprep.subr.bf16.mxu0 0
        %620 = vmatpush1.bf16.msra.mxu0 0
        %621 = vmatprep.mubr.bf16.mxu0 0
        %622 = vmatmul.mubr.bf16.gmra.mrb[0].mxu0 %v517
        %v623 = vpop.f32.mrb[0].mxu0
        %v624 = vadd.f32 %v539, %v623
        %v625 = vpop.f32.mrb[0].mxu0
        %v626 = vpop.f32.mrb[0].mxu0
        %v627 = vpop.f32.mrb[0].mxu0
        %628 = vdwg.mxu0
        %v629 = vmax.f32 %v624, 0.0
        %v630 = vpack.c.bf16 %v629, %v629
        %v631 = vld [vmem:[#allocation10] sm:$0xf]
        %v632 = vld [vmem:[#allocation10 + $0x4] sm:$0xf]
        %v633 = vld [vmem:[#allocation10 + $0x8] sm:$0xf]
        %v634 = vld [vmem:[#allocation10 + $0xc] sm:$0xf]
        %v635 = vld [vmem:[#allocation10 + $0x10] sm:$0xf]
        %v636 = vld [vmem:[#allocation10 + $0x14] sm:$0xf]
        %v637 = vld [vmem:[#allocation10 + $0x18] sm:$0xf]
        %v638 = vld [vmem:[#allocation10 + $0x1c] sm:$0xf]
        %v639 = vld [vmem:[#allocation10 + $0x20] sm:$0xf]
        %v640 = vld [vmem:[#allocation10 + $0x24] sm:$0xf]
        %v641 = vld [vmem:[#allocation10 + $0x28] sm:$0xf]
        %v642 = vld [vmem:[#allocation10 + $0x2c] sm:$0xf]
        %v643 = vld [vmem:[#allocation10 + $0x30] sm:$0xf]
        %v644 = vld [vmem:[#allocation10 + $0x34] sm:$0xf]
        %v645 = vld [vmem:[#allocation10 + $0x38] sm:$0xf]
        %v646 = vld [vmem:[#allocation10 + $0x3c] sm:$0xf]
        %v647 = vld [vmem:[%s7] sm:$0x1]
        %v649 = vlaneseq
        %v650 = vshrl.u32 %v649, 7
        %v651 = vsub.s32 0, %v650
        %v652 = vrot.slane %v647, %v651
        %v670 = vunpack.c.l.b16 %v631
        %v671 = vunpack.c.l.b16 %v632
        %v672 = vunpack.c.l.b16 %v633
        %v673 = vunpack.c.l.b16 %v634
        %v674 = vunpack.c.l.b16 %v635
        %v675 = vunpack.c.l.b16 %v636
        %v676 = vunpack.c.l.b16 %v637
        %v677 = vunpack.c.l.b16 %v638
        %v678 = vunpack.c.l.b16 %v639
        %v679 = vunpack.c.l.b16 %v640
        %v680 = vunpack.c.l.b16 %v641
        %v681 = vunpack.c.l.b16 %v642
        %v682 = vunpack.c.l.b16 %v643
        %v683 = vunpack.c.l.b16 %v644
        %v684 = vunpack.c.l.b16 %v645
        %v685 = vunpack.c.l.b16 %v646
        %v686 = vpack.c.b16 %v671, %v670
        %v687 = vpack.c.b16 %v673, %v672
        %v688 = vpack.c.b16 %v675, %v674
        %v689 = vpack.c.b16 %v677, %v676
        %v690 = vpack.c.b16 %v679, %v678
        %v691 = vpack.c.b16 %v681, %v680
        %v692 = vpack.c.b16 %v683, %v682
        %v693 = vpack.c.b16 %v685, %v684
        %702 = vmatprep.subr.bf16.mxu0 0
        %703 = vmatpush1.bf16.msra.mxu0 %v686
        %704 = vmatprep.subr.bf16.mxu0 0
        %705 = vmatpush1.bf16.msra.mxu0 %v687
        %706 = vmatprep.subr.bf16.mxu0 0
        %707 = vmatpush1.bf16.msra.mxu0 %v688
        %708 = vmatprep.subr.bf16.mxu0 0
        %709 = vmatpush1.bf16.msra.mxu0 %v689
        %710 = vmatprep.subr.bf16.mxu0 0
        %711 = vmatpush1.bf16.msra.mxu0 %v690
        %712 = vmatprep.subr.bf16.mxu0 0
        %713 = vmatpush1.bf16.msra.mxu0 %v691
        %714 = vmatprep.subr.bf16.mxu0 0
        %715 = vmatpush1.bf16.msra.mxu0 %v692
        %716 = vmatprep.subr.bf16.mxu0 0
        %717 = vmatpush1.bf16.msra.mxu0 %v693
        %718 = vmatprep.subr.bf16.mxu0 0
        %719 = vmatpush1.bf16.msra.mxu0 0
        %720 = vmatprep.subr.bf16.mxu0 0
        %721 = vmatpush1.bf16.msra.mxu0 0
        %722 = vmatprep.subr.bf16.mxu0 0
        %723 = vmatpush1.bf16.msra.mxu0 0
        %724 = vmatprep.subr.bf16.mxu0 0
        %725 = vmatpush1.bf16.msra.mxu0 0
        %726 = vmatprep.subr.bf16.mxu0 0
        %727 = vmatpush1.bf16.msra.mxu0 0
        %728 = vmatprep.subr.bf16.mxu0 0
        %729 = vmatpush1.bf16.msra.mxu0 0
        %730 = vmatprep.subr.bf16.mxu0 0
        %731 = vmatpush1.bf16.msra.mxu0 0
        %732 = vmatprep.subr.bf16.mxu0 0
        %733 = vmatpush1.bf16.msra.mxu0 0
        %734 = vmatprep.mubr.bf16.mxu0 0
        %735 = vmatmul.mubr.bf16.gmra.mrb[0].mxu0 %v630
        %v736 = vpop.f32.mrb[0].mxu0
        %v737 = vadd.f32 %v652, %v736
        %v738 = vpop.f32.mrb[0].mxu0
        %v739 = vpop.f32.mrb[0].mxu0
        %v740 = vpop.f32.mrb[0].mxu0
        %741 = vdwg.mxu0
        %742 = vst [vmem:[%s400] sm:$0xff] %v737
        %s743 = sand.u32 %s215, 1
        %s744 = scalar_lea.sflag [#allocation4], %s743
        %s745 = sand.u32 %s215, 1
        %s746 = smul.addr %s745, 8
        %s747 = scalar_lea.vmem [#allocation11], %s746
        // Predicated region
        $region73: #{tpu_custom_call.1} parent=51 // pred_check
          %p748 = pneg %p225
        $region74: #{tpu_custom_call.1} parent=51 // pred_check_branch
          %750 = sbr.rel (%p748) target = $region76
        $region75: #{tpu_custom_call.1} parent=51 // pred_region
          %s752 = ssub.s32 128, 128
          %753 = vsyncadd %s744, %s752
          %s754 = smul.addr %s29, 128
          %s755 = scalar_lea.hbm %s8, %s754
          %s757 = sshll.u32 %s747, 4
          %s758 = int_to_ptr.vmem [resolvable:$true] %s757
          %760 = dma.vmem_to_hbm [thread:$0]  %s758, 128, %s755, %s744
        $region76: #{tpu_custom_call.1} parent=51 // pred_fallthru
          _
      $region52: #{tpu_custom_call.1} parent=5 // pred_fallthru
        _
      %p761 = scmp.le.s32.totalorder 2, %s24
      // Predicated region
      $region77: #{tpu_custom_call.1} parent=5 // pred_check
        %p762 = pneg %p761
      $region78: #{tpu_custom_call.1} parent=5 // pred_check_branch
        %764 = sbr.rel (%p762) target = $region80
      $region79: #{tpu_custom_call.1} parent=5 // pred_region
        %s765 = ssub.s32 %s24, 2
        // Predicated region
        $region81: #{tpu_custom_call.1} parent=79 // pred_check
          %p766 = pneg %p231
        $region82: #{tpu_custom_call.1} parent=79 // pred_check_branch
          %768 = sbr.rel (%p766) target = $region84
        $region83: #{tpu_custom_call.1} parent=79 // pred_region
          %s769 = sand.u32 %s216, 1
          %s770 = scalar_lea.sflag [#allocation4], %s769
          %s771 = sand.u32 %s216, 1
          %s772 = smul.addr %s771, 8
          %s773 = scalar_lea.vmem [#allocation11], %s772
          %774 = dma.done %s770, 128
        $region84: #{tpu_custom_call.1} parent=79 // pred_fallthru
          _
      $region80: #{tpu_custom_call.1} parent=5 // pred_fallthru
        _
    $region6: #{tpu_custom_call.1} parent=1 // loop_footer
      %s28 = sadd.s32 1, %s24
    $region7: #{tpu_custom_call.1} parent=1 // loop_footer_branch
      %23 = sbr.rel target = $region3
    $region8: #{tpu_custom_call.1} parent=1 // loop_exit
      _
    %775 = vsyncpa [#allocation3], 1
    %s776 = scalar_lea.sflag [#allocation3], 1
    %777 = vsyncpa %s776, 1
    %778 = vsyncpa [#allocation6], 1
    %s779 = scalar_lea.sflag [#allocation6], 1
    %780 = vsyncpa %s779, 1
    %781 = vsyncpa [#allocation9], 1
    %782 = vsyncpa [#allocation4], 1
    %s783 = scalar_lea.sflag [#allocation4], 1
    %784 = vsyncpa %s783, 1

</llo_original>
